<compile_context>
chip_gen: v7x
topology: tpu7x:2x2x1
jax: 0.10.0
libtpu: 0.0.40
codegen_flags: <defaults>
</compile_context>

<pallas_src>
import functools

import jax
import jax.numpy as jnp
from jax.experimental import pallas as pl
from jax.experimental.pallas import tpu as pltpu


def _round_up(n, m):
    return ((n + m - 1) // m) * m


def _choose_block_b(batch, requested):
    """Pick the batch-lane tile: big (overhead amortization), 128-aligned, and
    with >=2 grid steps for large batches so both v7x TensorCores get work."""
    requested = max(128, _round_up(requested, 128))
    if batch <= requested and batch <= 1024:
        # Small problem: one full-extent block (block dim == array dim is
        # always legal, even when it is not a multiple of 128).
        return batch
    return min(requested, _round_up(pl.cdiv(batch, 2), 128))


def _dueling_dqn_kernel(
    x_ref,            # (S, block_b)   x^T tile (batch on the lane axis), f32
    w1_ref, b1_ref,   # (H, S), (H, 1)        feature layer (transposed)
    wh_ref, bh_ref,   # (2H, H), (2H, 1)      fused [adv | val] hidden layer
    wo_ref, bo_ref,   # (A+1, 2H), (A+1, 1)   block-diag fused [adv | val] out
    q_ref,            # (A, block_b)   q^T tile, f32
    *, action_dim,
):
    dot_dtype = w1_ref.dtype          # f32 or bf16; x is cast in-kernel (no
    xT = x_ref[...].astype(dot_dtype)  # wrapper-side HBM pass over x).

    # feature^T = ReLU(W1^T @ x^T + b1^T)           (f32 accumulation on MXU)
    featT = jnp.maximum(
        jnp.dot(w1_ref[...], xT, preferred_element_type=jnp.float32)
        + b1_ref[...],
        0.0,
    )                                                    # (H, block_b) f32

    # fused head hidden layer: one matmul -> [adv_h | val_h]^T   (2H, block_b)
    hidT = jnp.maximum(
        jnp.dot(wh_ref[...], featT.astype(dot_dtype),
                preferred_element_type=jnp.float32) + bh_ref[...],
        0.0,
    )

    # fused head output: block-diagonal weights -> [advantage | value]^T
    outT = (
        jnp.dot(wo_ref[...], hidT.astype(dot_dtype),
                preferred_element_type=jnp.float32) + bo_ref[...]
    )                                                    # (A+1, block_b) f32

    advT = outT[:action_dim, :]                          # (A, block_b)
    valT = outT[action_dim:action_dim + 1, :]            # (1, block_b)

    # dueling combine: q = V + A - mean_a(A); sublane reduce + constant recip.
    adv_mean = jnp.sum(advT, axis=0, keepdims=True) * (1.0 / action_dim)
    q_ref[...] = (valT + advT - adv_mean).astype(q_ref.dtype)


@functools.partial(jax.jit, static_argnames=("block_b", "x_transposed"))
def dueling_dqn_forward(x, fused_params, *, block_b=8192, x_transposed=False):
    """x: (B, state_dim) f32 (or (state_dim, B) if x_transposed=True).
    fused_params: output of fuse_params().  Returns q: (B, action_dim) f32."""
    w1T, b1T, whT, bhT, woT, boT = fused_params

    # Lane-dense presentation: batch on the 128-lane axis.  If the caller can
    # already produce (state_dim, B) batches upstream, pass x_transposed=True
    # and this extra XLA transpose pass over x disappears.
    xT = x if x_transposed else x.T                      # (S, B)
    S, B = xT.shape
    H = w1T.shape[0]
    A = woT.shape[0] - 1

    bb = _choose_block_b(B, block_b)
    grid = (pl.cdiv(B, bb),)   # ragged B handled by partial boundary blocks

    flops = 2 * B * (S * H + H * (2 * H) + (2 * H) * (A + 1))
    bytes_accessed = (
        xT.size * xT.dtype.itemsize
        + sum(a.size * a.dtype.itemsize
              for a in (w1T, b1T, whT, bhT, woT, boT))
        + B * A * 4
    )

    def const_spec(shape):
        # Weights/biases: constant block index -> resident in VMEM across the
        # whole grid.  (pipeline_mode=pl.Buffered(1) would be a small extra
        # VMEM saving here; skipped as weights are tiny at these shapes.)
        return pl.BlockSpec(shape, lambda i: (0, 0))

    qT = pl.pallas_call(
        functools.partial(_dueling_dqn_kernel, action_dim=A),
        out_shape=jax.ShapeDtypeStruct((A, B), jnp.float32),
        grid=grid,
        in_specs=[
            pl.BlockSpec((S, bb), lambda i: (0, i)),     # x^T: tiled over batch lanes
            const_spec(w1T.shape), const_spec(b1T.shape),
            const_spec(whT.shape), const_spec(bhT.shape),
            const_spec(woT.shape), const_spec(boT.shape),
        ],
        out_specs=pl.BlockSpec((A, bb), lambda i: (0, i)),
        compiler_params=pltpu.CompilerParams(
            dimension_semantics=("parallel",),   # shard batch over v7x's 2 TCs
            vmem_limit_bytes=64 * 1024 * 1024,   # explicit headroom for big tiles
        ),
        cost_estimate=pl.CostEstimate(
            flops=flops, transcendentals=0, bytes_accessed=bytes_accessed
        ),
    )(xT, w1T, b1T, whT, bhT, woT, boT)

    return qT.T                                          # (B, A)


def init_params(key, state_dim, action_dim, hidden_dim):
    """Deterministic synthetic init. Linear weights stored as (in, out)."""
    ks = jax.random.split(key, 10)

    def lin(kw, kb, fan_in, fan_out):
        bound = 1.0 / jnp.sqrt(jnp.float32(fan_in))
        w = jax.random.uniform(kw, (fan_in, fan_out), jnp.float32, -bound, bound)
        b = jax.random.uniform(kb, (1, fan_out), jnp.float32, -bound, bound)
        return w, b

    w1, b1 = lin(ks[0], ks[1], state_dim, hidden_dim)
    wa1, ba1 = lin(ks[2], ks[3], hidden_dim, hidden_dim)
    wa2, ba2 = lin(ks[4], ks[5], hidden_dim, action_dim)
    wv1, bv1 = lin(ks[6], ks[7], hidden_dim, hidden_dim)
    wv2, bv2 = lin(ks[8], ks[9], hidden_dim, 1)
    return dict(
        w1=w1, b1=b1,
        wa1=wa1, ba1=ba1, wa2=wa2, ba2=ba2,
        wv1=wv1, bv1=bv1, wv2=wv2, bv2=bv2,
    )


def fuse_params(p, compute_dtype=jnp.float32):
    """One-time head fusion + transpose + dtype cast (outside the hot path).

    Produces weights in the transposed (out, in) layout the kernel needs and
    stores them once in `compute_dtype` (bf16 halves resident weight VMEM/DMA
    on every generation; biases stay f32 for the epilogue)."""
    H = p["wa1"].shape[0]
    A = p["wa2"].shape[1]

    w1T = p["w1"].T                                               # (H, S)
    whT = jnp.concatenate([p["wa1"].T, p["wv1"].T], axis=0)       # (2H, H)
    woT = jnp.zeros((A + 1, 2 * H), jnp.float32)                  # block-diag
    woT = woT.at[:A, :H].set(p["wa2"].T).at[A:, H:].set(p["wv2"].T)

    b1T = p["b1"].T                                               # (H, 1)
    bhT = jnp.concatenate([p["ba1"].T, p["bv1"].T], axis=0)       # (2H, 1)
    boT = jnp.concatenate([p["ba2"].T, p["bv2"].T], axis=0)       # (A+1, 1)

    cd = compute_dtype
    return (w1T.astype(cd), b1T.astype(jnp.float32),
            whT.astype(cd), bhT.astype(jnp.float32),
            woT.astype(cd), boT.astype(jnp.float32))


def reference_forward(x, p):
    """Pure-JAX reference matching the PyTorch module (full-precision dots)."""
    dot = functools.partial(jnp.dot, precision=jax.lax.Precision.HIGHEST)
    feature = jax.nn.relu(dot(x, p["w1"]) + p["b1"])
    adv = dot(jax.nn.relu(dot(feature, p["wa1"]) + p["ba1"]), p["wa2"]) + p["ba2"]
    val = dot(jax.nn.relu(dot(feature, p["wv1"]) + p["bv1"]), p["wv2"]) + p["bv2"]
    return val + adv - adv.mean(axis=-1, keepdims=True)


if __name__ == "__main__":
    key = jax.random.PRNGKey(0)
    k_x, k_p, k_x2 = jax.random.split(key, 3)

    state_dim, action_dim, hidden_dim = 16, 8, 32
    params = init_params(k_p, state_dim, action_dim, hidden_dim)
    fused_f32 = fuse_params(params)                       # f32 weights

    # Small batch (single full-extent block).
    x = jax.random.normal(k_x, (8, state_dim), jnp.float32)
    q = dueling_dqn_forward(x, fused_f32)
    jax.block_until_ready(q)
    q_ref = reference_forward(x, params)
    assert q.shape == (8, action_dim)
    assert jnp.allclose(q, q_ref, atol=1e-4, rtol=1e-4), "f32 mismatch (B=8)"

    # Non-divisible batch with a multi-step grid: exercises partial boundary
    # blocks on the lane (batch) axis and the megacore-parallel grid path.
    x2 = jax.random.normal(k_x2, (300, state_dim), jnp.float32)
    q2 = dueling_dqn_forward(x2, fused_f32, block_b=128)
    jax.block_until_ready(q2)
    q2_ref = reference_forward(x2, params)
    assert q2.shape == (300, action_dim)
    assert jnp.allclose(q2, q2_ref, atol=1e-4, rtol=1e-4), "f32 mismatch (B=300)"

    # bf16 matmul operands (weights stored once in bf16; x cast in-kernel),
    # f32 accumulation and f32 epilogue/output.
    fused_bf16 = fuse_params(params, compute_dtype=jnp.bfloat16)
    q2_bf16 = dueling_dqn_forward(x2, fused_bf16, block_b=128)
    jax.block_until_ready(q2_bf16)
    assert jnp.allclose(q2_bf16, q2_ref, atol=1e-1, rtol=1e-1), "bf16 mismatch"

    print("KERNEL_OK")
</pallas_src>

<mosaic_0001>
module attributes {stable_mosaic.version = 11 : i64} {
  func.func @_dueling_dqn_kernel(%arg0: i32, %arg1: memref<16x8xf32, #tpu.memory_space<vmem>>, %arg2: memref<32x16xf32, #tpu.memory_space<vmem>>, %arg3: memref<32x1xf32, #tpu.memory_space<vmem>>, %arg4: memref<64x32xf32, #tpu.memory_space<vmem>>, %arg5: memref<64x1xf32, #tpu.memory_space<vmem>>, %arg6: memref<9x64xf32, #tpu.memory_space<vmem>>, %arg7: memref<9x1xf32, #tpu.memory_space<vmem>>, %arg8: memref<8x8xf32, #tpu.memory_space<vmem>>) attributes {dimension_semantics = [#tpu.dimension_semantics<parallel>], iteration_bounds = array<i64: 1>, scalar_prefetch = 0 : i64, scratch_operands = 0 : i64, tpu.core_type = #tpu.core_type<tc>, window_params = [{transform_indices = @transform_0, window_bounds = array<i64: 16, 8>}, {pipeline_mode = #tpu.pipeline_mode<synchronous>, transform_indices = @transform_1, window_bounds = array<i64: 32, 16>}, {pipeline_mode = #tpu.pipeline_mode<synchronous>, transform_indices = @transform_2, window_bounds = array<i64: 32, 1>}, {pipeline_mode = #tpu.pipeline_mode<synchronous>, transform_indices = @transform_3, window_bounds = array<i64: 64, 32>}, {pipeline_mode = #tpu.pipeline_mode<synchronous>, transform_indices = @transform_4, window_bounds = array<i64: 64, 1>}, {pipeline_mode = #tpu.pipeline_mode<synchronous>, transform_indices = @transform_5, window_bounds = array<i64: 9, 64>}, {pipeline_mode = #tpu.pipeline_mode<synchronous>, transform_indices = @transform_6, window_bounds = array<i64: 9, 1>}, {transform_indices = @transform_7, window_bounds = array<i64: 8, 8>}]} {
    %c0 = arith.constant 0 : index
    %c0_0 = arith.constant 0 : index
    %0 = vector.load %arg1[%c0, %c0_0] : memref<16x8xf32, #tpu.memory_space<vmem>>, vector<16x8xf32>
    %c0_1 = arith.constant 0 : index
    %c0_2 = arith.constant 0 : index
    %1 = vector.load %arg2[%c0_1, %c0_2] : memref<32x16xf32, #tpu.memory_space<vmem>>, vector<32x16xf32>
    %cst = arith.constant dense<0.000000e+00> : vector<32x8xf32>
    %2 = tpu.matmul %1, %0, %cst {dimension_numbers = #tpu.dot_dimension_numbers<[1], [0], [0], [1], [0, 0, 1, 1], [], []>} : vector<32x16xf32>, vector<16x8xf32>, vector<32x8xf32> -> vector<32x8xf32>
    %c0_3 = arith.constant 0 : index
    %c0_4 = arith.constant 0 : index
    %3 = vector.load %arg3[%c0_3, %c0_4] : memref<32x1xf32, #tpu.memory_space<vmem>>, vector<32x1xf32>
    %4 = vector.broadcast %3 : vector<32x1xf32> to vector<32x8xf32>
    %5 = arith.addf %2, %4 : vector<32x8xf32>
    %cst_5 = arith.constant 0.000000e+00 : f32
    %6 = vector.broadcast %cst_5 : f32 to vector<32x8xf32>
    %7 = arith.maximumf %5, %6 : vector<32x8xf32>
    %c0_6 = arith.constant 0 : index
    %c0_7 = arith.constant 0 : index
    %8 = vector.load %arg4[%c0_6, %c0_7] : memref<64x32xf32, #tpu.memory_space<vmem>>, vector<64x32xf32>
    %cst_8 = arith.constant dense<0.000000e+00> : vector<64x8xf32>
    %9 = tpu.matmul %8, %7, %cst_8 {dimension_numbers = #tpu.dot_dimension_numbers<[1], [0], [0], [1], [0, 0, 1, 1], [], []>} : vector<64x32xf32>, vector<32x8xf32>, vector<64x8xf32> -> vector<64x8xf32>
    %c0_9 = arith.constant 0 : index
    %c0_10 = arith.constant 0 : index
    %10 = vector.load %arg5[%c0_9, %c0_10] : memref<64x1xf32, #tpu.memory_space<vmem>>, vector<64x1xf32>
    %11 = vector.broadcast %10 : vector<64x1xf32> to vector<64x8xf32>
    %12 = arith.addf %9, %11 : vector<64x8xf32>
    %cst_11 = arith.constant 0.000000e+00 : f32
    %13 = vector.broadcast %cst_11 : f32 to vector<64x8xf32>
    %14 = arith.maximumf %12, %13 : vector<64x8xf32>
    %c0_12 = arith.constant 0 : index
    %c0_13 = arith.constant 0 : index
    %15 = vector.load %arg6[%c0_12, %c0_13] : memref<9x64xf32, #tpu.memory_space<vmem>>, vector<9x64xf32>
    %cst_14 = arith.constant dense<0.000000e+00> : vector<9x8xf32>
    %16 = tpu.matmul %15, %14, %cst_14 {dimension_numbers = #tpu.dot_dimension_numbers<[1], [0], [0], [1], [0, 0, 1, 1], [], []>} : vector<9x64xf32>, vector<64x8xf32>, vector<9x8xf32> -> vector<9x8xf32>
    %c0_15 = arith.constant 0 : index
    %c0_16 = arith.constant 0 : index
    %17 = vector.load %arg7[%c0_15, %c0_16] : memref<9x1xf32, #tpu.memory_space<vmem>>, vector<9x1xf32>
    %18 = vector.broadcast %17 : vector<9x1xf32> to vector<9x8xf32>
    %19 = arith.addf %16, %18 : vector<9x8xf32>
    %20 = vector.extract_strided_slice %19 {offsets = [0, 0], sizes = [8, 8], strides = [1, 1]} : vector<9x8xf32> to vector<8x8xf32>
    %21 = vector.extract_strided_slice %19 {offsets = [8, 0], sizes = [1, 8], strides = [1, 1]} : vector<9x8xf32> to vector<1x8xf32>
    %cst_17 = arith.constant dense<0.000000e+00> : vector<8xf32>
    %22 = vector.multi_reduction <add>, %20, %cst_17 [0] : vector<8x8xf32> to vector<8xf32>
    %23 = vector.shape_cast %22 : vector<8xf32> to vector<1x8xf32>
    %cst_18 = arith.constant 1.250000e-01 : f32
    %24 = vector.broadcast %cst_18 : f32 to vector<1x8xf32>
    %25 = arith.mulf %23, %24 : vector<1x8xf32>
    %26 = vector.broadcast %21 : vector<1x8xf32> to vector<8x8xf32>
    %27 = arith.addf %26, %20 : vector<8x8xf32>
    %28 = vector.broadcast %25 : vector<1x8xf32> to vector<8x8xf32>
    %29 = arith.subf %27, %28 : vector<8x8xf32>
    %c0_19 = arith.constant 0 : index
    %c0_20 = arith.constant 0 : index
    %30 = vector.load %arg8[%c0_19, %c0_20] : memref<8x8xf32, #tpu.memory_space<vmem>>, vector<8x8xf32>
    tpu.vector_store %arg8[%c0_19, %c0_20], %29 {strides = array<i32>} : memref<8x8xf32, #tpu.memory_space<vmem>>, vector<8x8xf32>,
    return
  }
  func.func @transform_0(%arg0: i32) -> (i32, i32) {
    %c0_i32 = arith.constant 0 : i32
    %c0_i32_0 = arith.constant 0 : i32
    return %c0_i32, %arg0 : i32, i32
  }
  func.func @transform_1(%arg0: i32) -> (i32, i32) {
    %c0_i32 = arith.constant 0 : i32
    %c0_i32_0 = arith.constant 0 : i32
    %c0_i32_1 = arith.constant 0 : i32
    return %c0_i32, %c0_i32_0 : i32, i32
  }
  func.func @transform_2(%arg0: i32) -> (i32, i32) {
    %c0_i32 = arith.constant 0 : i32
    %c0_i32_0 = arith.constant 0 : i32
    %c0_i32_1 = arith.constant 0 : i32
    return %c0_i32, %c0_i32_0 : i32, i32
  }
  func.func @transform_3(%arg0: i32) -> (i32, i32) {
    %c0_i32 = arith.constant 0 : i32
    %c0_i32_0 = arith.constant 0 : i32
    %c0_i32_1 = arith.constant 0 : i32
    return %c0_i32, %c0_i32_0 : i32, i32
  }
  func.func @transform_4(%arg0: i32) -> (i32, i32) {
    %c0_i32 = arith.constant 0 : i32
    %c0_i32_0 = arith.constant 0 : i32
    %c0_i32_1 = arith.constant 0 : i32
    return %c0_i32, %c0_i32_0 : i32, i32
  }
  func.func @transform_5(%arg0: i32) -> (i32, i32) {
    %c0_i32 = arith.constant 0 : i32
    %c0_i32_0 = arith.constant 0 : i32
    %c0_i32_1 = arith.constant 0 : i32
    return %c0_i32, %c0_i32_0 : i32, i32
  }
  func.func @transform_6(%arg0: i32) -> (i32, i32) {
    %c0_i32 = arith.constant 0 : i32
    %c0_i32_0 = arith.constant 0 : i32
    %c0_i32_1 = arith.constant 0 : i32
    return %c0_i32, %c0_i32_0 : i32, i32
  }
  func.func @transform_7(%arg0: i32) -> (i32, i32) {
    %c0_i32 = arith.constant 0 : i32
    %c0_i32_0 = arith.constant 0 : i32
    return %c0_i32, %arg0 : i32, i32
  }
}

</mosaic_0001>

<llo_original>
// kernel: dueling_dqn_forward.1
$region0: #{dueling_dqn_forward.1}
  #allocation0 [shape = 'u32[]', space=smem, size = 0x4, offset = 0x4, fixed_abs, tag = 'smem constant byte address 0x4 - core index']
  #allocation1 [shape = 'u32[144,128]{1,0:T(1,128)}', space=vmem, size = 0x12000, scoped, tag = 'internal scratch']
  %s0 = inlined_call_operand.hbm [shape: f32[16,8], index: 0, kind: input, shape index: {}]
  %s1 = inlined_call_operand.hbm [shape: f32[32,16], index: 1, kind: input, shape index: {}]
  %s2 = inlined_call_operand.hbm [shape: f32[32,1], index: 2, kind: input, shape index: {}]
  %s3 = inlined_call_operand.hbm [shape: f32[64,32], index: 3, kind: input, shape index: {}]
  %s4 = inlined_call_operand.hbm [shape: f32[64,1], index: 4, kind: input, shape index: {}]
  %s5 = inlined_call_operand.hbm [shape: f32[9,64], index: 5, kind: input, shape index: {}]
  %s6 = inlined_call_operand.hbm [shape: f32[9,1], index: 6, kind: input, shape index: {}]
  %s7 = inlined_call_operand.hbm [shape: f32[8,8], index: 7, kind: output, shape index: {}]
  %s8 = sld [smem:[#allocation0]]
  $region66: #{dueling_dqn_forward.1} parent=0
    _
  %s10 = ssub.s32 1, %s8
  %s11 = scalar_select 0, %s10, %s8
  $region1: #{dueling_dqn_forward.1} parent=0
    #allocation2 [shape = 'u8[8192]{0}', space=vmem, size = 0x2000, scoped, tag = 'input window, operand 0, single buffered']
    #allocation3 [shape = 's32[1]{0}', space=sflag, size = 0x4, scoped, tag = 'scoped memory for dueling_dqn_forward.1']
    #allocation4 [shape = 's32[1]{0}', space=sflag, size = 0x4, scoped, tag = 'scoped memory for dueling_dqn_forward.1']
    #allocation5 [shape = 'u8[16384]{0}', space=vmem, size = 0x4000, scoped, tag = 'input window, operand 1, single buffered']
    #allocation6 [shape = 's32[1]{0}', space=sflag, size = 0x4, scoped, tag = 'scoped memory for dueling_dqn_forward.1']
    #allocation7 [shape = 'u8[16384]{0}', space=vmem, size = 0x4000, scoped, tag = 'input window, operand 2, single buffered']
    #allocation8 [shape = 'u8[32768]{0}', space=vmem, size = 0x8000, scoped, tag = 'input window, operand 3, single buffered']
    #allocation9 [shape = 's32[1]{0}', space=sflag, size = 0x4, scoped, tag = 'scoped memory for dueling_dqn_forward.1']
    #allocation10 [shape = 'u8[32768]{0}', space=vmem, size = 0x8000, scoped, tag = 'input window, operand 4, single buffered']
    #allocation11 [shape = 'u8[8192]{0}', space=vmem, size = 0x2000, scoped, tag = 'input window, operand 5, single buffered']
    #allocation12 [shape = 's32[1]{0}', space=sflag, size = 0x4, scoped, tag = 'scoped memory for dueling_dqn_forward.1']
    #allocation13 [shape = 'u8[8192]{0}', space=vmem, size = 0x2000, scoped, tag = 'input window, operand 6, single buffered']
    #allocation14 [shape = 'u8[4096]{0}', space=vmem, size = 0x1000, scoped, tag = 'output window, operand 0, single buffered']
    %12 = vsyncpa [#allocation3], 0
    %13 = vsyncpa [#allocation6], 0
    %14 = vsyncpa [#allocation9], 0
    %15 = vsyncpa [#allocation12], 0
    %16 = vsyncpa [#allocation4], 0
    // Predicated region
    $region2: #{dueling_dqn_forward.1} parent=1 // pred_check
      _
    $region3: #{dueling_dqn_forward.1} parent=1 // pred_check_branch
      %18 = sbr.rel (0) target = $region5
    $region4: #{dueling_dqn_forward.1} parent=1 // pred_region
      %s20 = ssub.s32 256, 256
      %21 = vsyncadd [#allocation3], %s20
      %s22 = sshll.u32 [#allocation2], 4
      %s23 = int_to_ptr.vmem [resolvable:$true] %s22
      %28 = dma.hbm_to_vmem [thread:$0]  %s0, 256, %s23, [#allocation3], 128, 128, 8
    $region5: #{dueling_dqn_forward.1} parent=1 // pred_fallthru
      _
    // Predicated region
    $region6: #{dueling_dqn_forward.1} parent=1 // pred_check
      _
    $region7: #{dueling_dqn_forward.1} parent=1 // pred_check_branch
      %30 = sbr.rel (0) target = $region9
    $region8: #{dueling_dqn_forward.1} parent=1 // pred_region
      %s32 = ssub.s32 512, 512
      %33 = vsyncadd [#allocation6], %s32
      %s34 = sshll.u32 [#allocation5], 4
      %s35 = int_to_ptr.vmem [resolvable:$true] %s34
      %40 = dma.hbm_to_vmem [thread:$0]  %s1, 512, %s35, [#allocation6], 128, 128, 8
    $region9: #{dueling_dqn_forward.1} parent=1 // pred_fallthru
      _
    // Predicated region
    $region10: #{dueling_dqn_forward.1} parent=1 // pred_check
      _
    $region11: #{dueling_dqn_forward.1} parent=1 // pred_check_branch
      %42 = sbr.rel (0) target = $region13
    $region12: #{dueling_dqn_forward.1} parent=1 // pred_region
      %s44 = ssub.s32 512, 512
      %45 = vsyncadd [#allocation6], %s44
      %s46 = sshll.u32 [#allocation7], 4
      %s47 = int_to_ptr.vmem [resolvable:$true] %s46
      %52 = dma.hbm_to_vmem [thread:$0]  %s2, 512, %s47, [#allocation6], 128, 128, 8
    $region13: #{dueling_dqn_forward.1} parent=1 // pred_fallthru
      _
    // Predicated region
    $region14: #{dueling_dqn_forward.1} parent=1 // pred_check
      _
    $region15: #{dueling_dqn_forward.1} parent=1 // pred_check_branch
      %54 = sbr.rel (0) target = $region17
    $region16: #{dueling_dqn_forward.1} parent=1 // pred_region
      %s56 = ssub.s32 1024, 1024
      %57 = vsyncadd [#allocation9], %s56
      %s58 = sshll.u32 [#allocation8], 4
      %s59 = int_to_ptr.vmem [resolvable:$true] %s58
      %64 = dma.hbm_to_vmem [thread:$0]  %s3, 1024, %s59, [#allocation9], 128, 128, 8
    $region17: #{dueling_dqn_forward.1} parent=1 // pred_fallthru
      _
    // Predicated region
    $region18: #{dueling_dqn_forward.1} parent=1 // pred_check
      _
    $region19: #{dueling_dqn_forward.1} parent=1 // pred_check_branch
      %66 = sbr.rel (0) target = $region21
    $region20: #{dueling_dqn_forward.1} parent=1 // pred_region
      %s68 = ssub.s32 1024, 1024
      %69 = vsyncadd [#allocation9], %s68
      %s70 = sshll.u32 [#allocation10], 4
      %s71 = int_to_ptr.vmem [resolvable:$true] %s70
      %76 = dma.hbm_to_vmem [thread:$0]  %s4, 1024, %s71, [#allocation9], 128, 128, 8
    $region21: #{dueling_dqn_forward.1} parent=1 // pred_fallthru
      _
    // Predicated region
    $region22: #{dueling_dqn_forward.1} parent=1 // pred_check
      _
    $region23: #{dueling_dqn_forward.1} parent=1 // pred_check_branch
      %78 = sbr.rel (0) target = $region25
    $region24: #{dueling_dqn_forward.1} parent=1 // pred_region
      %s80 = ssub.s32 256, 256
      %81 = vsyncadd [#allocation12], %s80
      %s82 = sshll.u32 [#allocation11], 4
      %s83 = int_to_ptr.vmem [resolvable:$true] %s82
      %88 = dma.hbm_to_vmem [thread:$0]  %s5, 256, %s83, [#allocation12], 128, 128, 8
    $region25: #{dueling_dqn_forward.1} parent=1 // pred_fallthru
      _
    // Predicated region
    $region26: #{dueling_dqn_forward.1} parent=1 // pred_check
      _
    $region27: #{dueling_dqn_forward.1} parent=1 // pred_check_branch
      %90 = sbr.rel (0) target = $region29
    $region28: #{dueling_dqn_forward.1} parent=1 // pred_region
      %s92 = ssub.s32 256, 256
      %93 = vsyncadd [#allocation12], %s92
      %s94 = sshll.u32 [#allocation13], 4
      %s95 = int_to_ptr.vmem [resolvable:$true] %s94
      %100 = dma.hbm_to_vmem [thread:$0]  %s6, 256, %s95, [#allocation12], 128, 128, 8
    $region29: #{dueling_dqn_forward.1} parent=1 // pred_fallthru
      _
    // Predicated region
    $region30: #{dueling_dqn_forward.1} parent=1 // pred_check
      _
    $region31: #{dueling_dqn_forward.1} parent=1 // pred_check_branch
      %102 = sbr.rel (0) target = $region33
    $region32: #{dueling_dqn_forward.1} parent=1 // pred_region
      %103 = dma.done [#allocation3], 256
    $region33: #{dueling_dqn_forward.1} parent=1 // pred_fallthru
      _
    // Predicated region
    $region34: #{dueling_dqn_forward.1} parent=1 // pred_check
      _
    $region35: #{dueling_dqn_forward.1} parent=1 // pred_check_branch
      %105 = sbr.rel (0) target = $region37
    $region36: #{dueling_dqn_forward.1} parent=1 // pred_region
      %106 = dma.done [#allocation6], 512
    $region37: #{dueling_dqn_forward.1} parent=1 // pred_fallthru
      _
    // Predicated region
    $region38: #{dueling_dqn_forward.1} parent=1 // pred_check
      _
    $region39: #{dueling_dqn_forward.1} parent=1 // pred_check_branch
      %108 = sbr.rel (0) target = $region41
    $region40: #{dueling_dqn_forward.1} parent=1 // pred_region
      %109 = dma.done [#allocation6], 512
    $region41: #{dueling_dqn_forward.1} parent=1 // pred_fallthru
      _
    // Predicated region
    $region42: #{dueling_dqn_forward.1} parent=1 // pred_check
      _
    $region43: #{dueling_dqn_forward.1} parent=1 // pred_check_branch
      %111 = sbr.rel (0) target = $region45
    $region44: #{dueling_dqn_forward.1} parent=1 // pred_region
      %112 = dma.done [#allocation9], 1024
    $region45: #{dueling_dqn_forward.1} parent=1 // pred_fallthru
      _
    // Predicated region
    $region46: #{dueling_dqn_forward.1} parent=1 // pred_check
      _
    $region47: #{dueling_dqn_forward.1} parent=1 // pred_check_branch
      %114 = sbr.rel (0) target = $region49
    $region48: #{dueling_dqn_forward.1} parent=1 // pred_region
      %115 = dma.done [#allocation9], 1024
    $region49: #{dueling_dqn_forward.1} parent=1 // pred_fallthru
      _
    // Predicated region
    $region50: #{dueling_dqn_forward.1} parent=1 // pred_check
      _
    $region51: #{dueling_dqn_forward.1} parent=1 // pred_check_branch
      %117 = sbr.rel (0) target = $region53
    $region52: #{dueling_dqn_forward.1} parent=1 // pred_region
      %118 = dma.done [#allocation12], 256
    $region53: #{dueling_dqn_forward.1} parent=1 // pred_fallthru
      _
    // Predicated region
    $region54: #{dueling_dqn_forward.1} parent=1 // pred_check
      _
    $region55: #{dueling_dqn_forward.1} parent=1 // pred_check_branch
      %120 = sbr.rel (0) target = $region57
    $region56: #{dueling_dqn_forward.1} parent=1 // pred_region
      %121 = dma.done [#allocation12], 256
    $region57: #{dueling_dqn_forward.1} parent=1 // pred_fallthru
      _
    %v122 = vld [vmem:[#allocation2] sm:$0xff]
    %v123 = vld [vmem:[#allocation2 + $0x8] sm:$0xff]
    %v124 = vld [vmem:[#allocation5] sm:$0xff]
    %v125 = vld [vmem:[#allocation5 + $0x8] sm:$0xff]
    %v126 = vld [vmem:[#allocation5 + $0x10] sm:$0xff]
    %v127 = vld [vmem:[#allocation5 + $0x18] sm:$0xff]
    %v128 = vld [vmem:[#allocation7] sm:$0xff]
    %v129 = vld [vmem:[#allocation7 + $0x8] sm:$0xff]
    %v130 = vld [vmem:[#allocation7 + $0x10] sm:$0xff]
    %v131 = vld [vmem:[#allocation7 + $0x18] sm:$0xff]
    %133 = vset.pattern.permute.xlu0 0
    %134 = vperm.xlu0 %133, %v128
    %v135 = vpop.permute.xlu0 %134
    %138 = vset.pattern.permute.xlu0 0
    %139 = vperm.xlu0 %138, %v129
    %v140 = vpop.permute.xlu0 %139
    %143 = vset.pattern.permute.xlu0 0
    %144 = vperm.xlu0 %143, %v130
    %v145 = vpop.permute.xlu0 %144
    %148 = vset.pattern.permute.xlu0 0
    %149 = vperm.xlu0 %148, %v131
    %v150 = vpop.permute.xlu0 %149
    %vm152 = vcmask 130048
    %v154 = vsel %vm152, %v124, 0
    %v157 = vsel %vm152, %v125, 0
    %v160 = vsel %vm152, %v126, 0
    %v163 = vsel %vm152, %v127, 0
    %165 = vmatprep.subr.mxu0 0.0
    %166 = vmatpush1.msra.mxu0 %v122
    %167 = vmatprep.subr.mxu0 0.0
    %168 = vmatpush1.msra.mxu0 %v123
    %169 = vmatprep.subr.mxu0 0.0
    %170 = vmatpush1.msra.mxu0 0.0
    %171 = vmatprep.subr.mxu0 0.0
    %172 = vmatpush1.msra.mxu0 0.0
    %173 = vmatprep.subr.mxu0 0.0
    %174 = vmatpush1.msra.mxu0 0.0
    %175 = vmatprep.subr.mxu0 0.0
    %176 = vmatpush1.msra.mxu0 0.0
    %177 = vmatprep.subr.mxu0 0.0
    %178 = vmatpush1.msra.mxu0 0.0
    %179 = vmatprep.subr.mxu0 0.0
    %180 = vmatpush1.msra.mxu0 0.0
    %181 = vmatprep.subr.mxu0 0.0
    %182 = vmatpush1.msra.mxu0 0.0
    %183 = vmatprep.subr.mxu0 0.0
    %184 = vmatpush1.msra.mxu0 0.0
    %185 = vmatprep.subr.mxu0 0.0
    %186 = vmatpush1.msra.mxu0 0.0
    %187 = vmatprep.subr.mxu0 0.0
    %188 = vmatpush1.msra.mxu0 0.0
    %189 = vmatprep.subr.mxu0 0.0
    %190 = vmatpush1.msra.mxu0 0.0
    %191 = vmatprep.subr.mxu0 0.0
    %192 = vmatpush1.msra.mxu0 0.0
    %193 = vmatprep.subr.mxu0 0.0
    %194 = vmatpush1.msra.mxu0 0.0
    %195 = vmatprep.subr.mxu0 0.0
    %196 = vmatpush1.msra.mxu0 0.0
    %197 = vmatprep.subr.mxu0 0.0
    %198 = vmatpush1.msra.mxu0 0.0
    %199 = vmatprep.subr.mxu0 0.0
    %200 = vmatpush1.msra.mxu0 0.0
    %201 = vmatprep.subr.mxu0 0.0
    %202 = vmatpush1.msra.mxu0 0.0
    %203 = vmatprep.subr.mxu0 0.0
    %204 = vmatpush1.msra.mxu0 0.0
    %205 = vmatprep.subr.mxu0 0.0
    %206 = vmatpush1.msra.mxu0 0.0
    %207 = vmatprep.subr.mxu0 0.0
    %208 = vmatpush1.msra.mxu0 0.0
    %209 = vmatprep.subr.mxu0 0.0
    %210 = vmatpush1.msra.mxu0 0.0
    %211 = vmatprep.subr.mxu0 0.0
    %212 = vmatpush1.msra.mxu0 0.0
    %213 = vmatprep.subr.mxu0 0.0
    %214 = vmatpush1.msra.mxu0 0.0
    %215 = vmatprep.subr.mxu0 0.0
    %216 = vmatpush1.msra.mxu0 0.0
    %217 = vmatprep.subr.mxu0 0.0
    %218 = vmatpush1.msra.mxu0 0.0
    %219 = vmatprep.subr.mxu0 0.0
    %220 = vmatpush1.msra.mxu0 0.0
    %221 = vmatprep.subr.mxu0 0.0
    %222 = vmatpush1.msra.mxu0 0.0
    %223 = vmatprep.subr.mxu0 0.0
    %224 = vmatpush1.msra.mxu0 0.0
    %225 = vmatprep.subr.mxu0 0.0
    %226 = vmatpush1.msra.mxu0 0.0
    %227 = vmatprep.subr.mxu0 0.0
    %228 = vmatpush1.msra.mxu0 0.0
    %229 = vmatprep.mubr.f32.mxu0 0.0
    %230 = vmatmul.mubr.f32.gmra.mrb[0].mxu0 %v154
    %v231 = vpop.f32.mrb[0].mxu0
    %v232 = vadd.f32 %v135, %v231
    %v233 = vpop.f32.mrb[0].mxu0
    %234 = vmatprep.mubr.f32.mxu0 0.0
    %235 = vmatmul.mubr.f32.gmra.mrb[0].mxu0 %v157
    %v236 = vpop.f32.mrb[0].mxu0
    %v237 = vadd.f32 %v140, %v236
    %v238 = vpop.f32.mrb[0].mxu0
    %239 = vmatprep.mubr.f32.mxu0 0.0
    %240 = vmatmul.mubr.f32.gmra.mrb[0].mxu0 %v160
    %v241 = vpop.f32.mrb[0].mxu0
    %v242 = vadd.f32 %v145, %v241
    %v243 = vpop.f32.mrb[0].mxu0
    %244 = vmatprep.mubr.f32.mxu0 0.0
    %245 = vmatmul.mubr.f32.gmra.mrb[0].mxu0 %v163
    %v246 = vpop.f32.mrb[0].mxu0
    %v247 = vadd.f32 %v150, %v246
    %v248 = vpop.f32.mrb[0].mxu0
    %249 = vdwg.mxu0
    %v250 = vmax.f32 %v232, 0.0
    %v251 = vmax.f32 %v237, 0.0
    %v252 = vmax.f32 %v242, 0.0
    %v253 = vmax.f32 %v247, 0.0
    %v254 = vld [vmem:[#allocation8] sm:$0xff]
    %v255 = vld [vmem:[#allocation8 + $0x8] sm:$0xff]
    %v256 = vld [vmem:[#allocation8 + $0x10] sm:$0xff]
    %v257 = vld [vmem:[#allocation8 + $0x18] sm:$0xff]
    %v258 = vld [vmem:[#allocation8 + $0x20] sm:$0xff]
    %v259 = vld [vmem:[#allocation8 + $0x28] sm:$0xff]
    %v260 = vld [vmem:[#allocation8 + $0x30] sm:$0xff]
    %v261 = vld [vmem:[#allocation8 + $0x38] sm:$0xff]
    %v262 = vld [vmem:[#allocation10] sm:$0xff]
    %v263 = vld [vmem:[#allocation10 + $0x8] sm:$0xff]
    %v264 = vld [vmem:[#allocation10 + $0x10] sm:$0xff]
    %v265 = vld [vmem:[#allocation10 + $0x18] sm:$0xff]
    %v266 = vld [vmem:[#allocation10 + $0x20] sm:$0xff]
    %v267 = vld [vmem:[#allocation10 + $0x28] sm:$0xff]
    %v268 = vld [vmem:[#allocation10 + $0x30] sm:$0xff]
    %v269 = vld [vmem:[#allocation10 + $0x38] sm:$0xff]
    %271 = vset.pattern.permute.xlu0 0
    %272 = vperm.xlu0 %271, %v262
    %v273 = vpop.permute.xlu0 %272
    %276 = vset.pattern.permute.xlu0 0
    %277 = vperm.xlu0 %276, %v263
    %v278 = vpop.permute.xlu0 %277
    %281 = vset.pattern.permute.xlu0 0
    %282 = vperm.xlu0 %281, %v264
    %v283 = vpop.permute.xlu0 %282
    %286 = vset.pattern.permute.xlu0 0
    %287 = vperm.xlu0 %286, %v265
    %v288 = vpop.permute.xlu0 %287
    %291 = vset.pattern.permute.xlu0 0
    %292 = vperm.xlu0 %291, %v266
    %v293 = vpop.permute.xlu0 %292
    %296 = vset.pattern.permute.xlu0 0
    %297 = vperm.xlu0 %296, %v267
    %v298 = vpop.permute.xlu0 %297
    %301 = vset.pattern.permute.xlu0 0
    %302 = vperm.xlu0 %301, %v268
    %v303 = vpop.permute.xlu0 %302
    %306 = vset.pattern.permute.xlu0 0
    %307 = vperm.xlu0 %306, %v269
    %v308 = vpop.permute.xlu0 %307
    %vm310 = vcmask 261120
    %v312 = vsel %vm310, %v254, 0
    %v315 = vsel %vm310, %v255, 0
    %v318 = vsel %vm310, %v256, 0
    %v321 = vsel %vm310, %v257, 0
    %v324 = vsel %vm310, %v258, 0
    %v327 = vsel %vm310, %v259, 0
    %v330 = vsel %vm310, %v260, 0
    %v333 = vsel %vm310, %v261, 0
    %335 = vmatprep.subr.mxu0 0.0
    %336 = vmatpush1.msra.mxu0 %v250
    %337 = vmatprep.subr.mxu0 0.0
    %338 = vmatpush1.msra.mxu0 %v251
    %339 = vmatprep.subr.mxu0 0.0
    %340 = vmatpush1.msra.mxu0 %v252
    %341 = vmatprep.subr.mxu0 0.0
    %342 = vmatpush1.msra.mxu0 %v253
    %343 = vmatprep.subr.mxu0 0.0
    %344 = vmatpush1.msra.mxu0 0.0
    %345 = vmatprep.subr.mxu0 0.0
    %346 = vmatpush1.msra.mxu0 0.0
    %347 = vmatprep.subr.mxu0 0.0
    %348 = vmatpush1.msra.mxu0 0.0
    %349 = vmatprep.subr.mxu0 0.0
    %350 = vmatpush1.msra.mxu0 0.0
    %351 = vmatprep.subr.mxu0 0.0
    %352 = vmatpush1.msra.mxu0 0.0
    %353 = vmatprep.subr.mxu0 0.0
    %354 = vmatpush1.msra.mxu0 0.0
    %355 = vmatprep.subr.mxu0 0.0
    %356 = vmatpush1.msra.mxu0 0.0
    %357 = vmatprep.subr.mxu0 0.0
    %358 = vmatpush1.msra.mxu0 0.0
    %359 = vmatprep.subr.mxu0 0.0
    %360 = vmatpush1.msra.mxu0 0.0
    %361 = vmatprep.subr.mxu0 0.0
    %362 = vmatpush1.msra.mxu0 0.0
    %363 = vmatprep.subr.mxu0 0.0
    %364 = vmatpush1.msra.mxu0 0.0
    %365 = vmatprep.subr.mxu0 0.0
    %366 = vmatpush1.msra.mxu0 0.0
    %367 = vmatprep.subr.mxu0 0.0
    %368 = vmatpush1.msra.mxu0 0.0
    %369 = vmatprep.subr.mxu0 0.0
    %370 = vmatpush1.msra.mxu0 0.0
    %371 = vmatprep.subr.mxu0 0.0
    %372 = vmatpush1.msra.mxu0 0.0
    %373 = vmatprep.subr.mxu0 0.0
    %374 = vmatpush1.msra.mxu0 0.0
    %375 = vmatprep.subr.mxu0 0.0
    %376 = vmatpush1.msra.mxu0 0.0
    %377 = vmatprep.subr.mxu0 0.0
    %378 = vmatpush1.msra.mxu0 0.0
    %379 = vmatprep.subr.mxu0 0.0
    %380 = vmatpush1.msra.mxu0 0.0
    %381 = vmatprep.subr.mxu0 0.0
    %382 = vmatpush1.msra.mxu0 0.0
    %383 = vmatprep.subr.mxu0 0.0
    %384 = vmatpush1.msra.mxu0 0.0
    %385 = vmatprep.subr.mxu0 0.0
    %386 = vmatpush1.msra.mxu0 0.0
    %387 = vmatprep.subr.mxu0 0.0
    %388 = vmatpush1.msra.mxu0 0.0
    %389 = vmatprep.subr.mxu0 0.0
    %390 = vmatpush1.msra.mxu0 0.0
    %391 = vmatprep.subr.mxu0 0.0
    %392 = vmatpush1.msra.mxu0 0.0
    %393 = vmatprep.subr.mxu0 0.0
    %394 = vmatpush1.msra.mxu0 0.0
    %395 = vmatprep.subr.mxu0 0.0
    %396 = vmatpush1.msra.mxu0 0.0
    %397 = vmatprep.subr.mxu0 0.0
    %398 = vmatpush1.msra.mxu0 0.0
    %399 = vmatprep.mubr.f32.mxu0 0.0
    %400 = vmatmul.mubr.f32.gmra.mrb[0].mxu0 %v312
    %v401 = vpop.f32.mrb[0].mxu0
    %v402 = vadd.f32 %v273, %v401
    %v403 = vpop.f32.mrb[0].mxu0
    %404 = vmatprep.mubr.f32.mxu0 0.0
    %405 = vmatmul.mubr.f32.gmra.mrb[0].mxu0 %v315
    %v406 = vpop.f32.mrb[0].mxu0
    %v407 = vadd.f32 %v278, %v406
    %v408 = vpop.f32.mrb[0].mxu0
    %409 = vmatprep.mubr.f32.mxu0 0.0
    %410 = vmatmul.mubr.f32.gmra.mrb[0].mxu0 %v318
    %v411 = vpop.f32.mrb[0].mxu0
    %v412 = vadd.f32 %v283, %v411
    %v413 = vpop.f32.mrb[0].mxu0
    %414 = vmatprep.mubr.f32.mxu0 0.0
    %415 = vmatmul.mubr.f32.gmra.mrb[0].mxu0 %v321
    %v416 = vpop.f32.mrb[0].mxu0
    %v417 = vadd.f32 %v288, %v416
    %v418 = vpop.f32.mrb[0].mxu0
    %419 = vmatprep.mubr.f32.mxu0 0.0
    %420 = vmatmul.mubr.f32.gmra.mrb[0].mxu0 %v324
    %v421 = vpop.f32.mrb[0].mxu0
    %v422 = vadd.f32 %v293, %v421
    %v423 = vpop.f32.mrb[0].mxu0
    %424 = vmatprep.mubr.f32.mxu0 0.0
    %425 = vmatmul.mubr.f32.gmra.mrb[0].mxu0 %v327
    %v426 = vpop.f32.mrb[0].mxu0
    %v427 = vadd.f32 %v298, %v426
    %v428 = vpop.f32.mrb[0].mxu0
    %429 = vmatprep.mubr.f32.mxu0 0.0
    %430 = vmatmul.mubr.f32.gmra.mrb[0].mxu0 %v330
    %v431 = vpop.f32.mrb[0].mxu0
    %v432 = vadd.f32 %v303, %v431
    %v433 = vpop.f32.mrb[0].mxu0
    %434 = vmatprep.mubr.f32.mxu0 0.0
    %435 = vmatmul.mubr.f32.gmra.mrb[0].mxu0 %v333
    %v436 = vpop.f32.mrb[0].mxu0
    %v437 = vadd.f32 %v308, %v436
    %v438 = vpop.f32.mrb[0].mxu0
    %439 = vdwg.mxu0
    %v440 = vmax.f32 %v402, 0.0
    %v441 = vmax.f32 %v407, 0.0
    %v442 = vmax.f32 %v412, 0.0
    %v443 = vmax.f32 %v417, 0.0
    %v444 = vmax.f32 %v422, 0.0
    %v445 = vmax.f32 %v427, 0.0
    %v446 = vmax.f32 %v432, 0.0
    %v447 = vmax.f32 %v437, 0.0
    %v448 = vld [vmem:[#allocation11] sm:$0xff]
    %v449 = vld [vmem:[#allocation11 + $0x8] sm:$0x1]
    %v450 = vld [vmem:[#allocation13] sm:$0xff]
    %v451 = vld [vmem:[#allocation13 + $0x8] sm:$0x1]
    %453 = vset.pattern.permute.xlu0 0
    %454 = vperm.xlu0 %453, %v450
    %v455 = vpop.permute.xlu0 %454
    %458 = vset.pattern.permute.xlu0 0
    %459 = vperm.xlu0 %458, %v451
    %v460 = vpop.permute.xlu0 %459
    %vm462 = vcmask 523264
    %v464 = vsel %vm462, %v448, 0
    %v467 = vsel %vm462, %v449, 0
    %469 = vmatprep.subr.mxu0 0.0
    %470 = vmatpush1.msra.mxu0 %v440
    %471 = vmatprep.subr.mxu0 0.0
    %472 = vmatpush1.msra.mxu0 %v441
    %473 = vmatprep.subr.mxu0 0.0
    %474 = vmatpush1.msra.mxu0 %v442
    %475 = vmatprep.subr.mxu0 0.0
    %476 = vmatpush1.msra.mxu0 %v443
    %477 = vmatprep.subr.mxu0 0.0
    %478 = vmatpush1.msra.mxu0 %v444
    %479 = vmatprep.subr.mxu0 0.0
    %480 = vmatpush1.msra.mxu0 %v445
    %481 = vmatprep.subr.mxu0 0.0
    %482 = vmatpush1.msra.mxu0 %v446
    %483 = vmatprep.subr.mxu0 0.0
    %484 = vmatpush1.msra.mxu0 %v447
    %485 = vmatprep.subr.mxu0 0.0
    %486 = vmatpush1.msra.mxu0 0.0
    %487 = vmatprep.subr.mxu0 0.0
    %488 = vmatpush1.msra.mxu0 0.0
    %489 = vmatprep.subr.mxu0 0.0
    %490 = vmatpush1.msra.mxu0 0.0
    %491 = vmatprep.subr.mxu0 0.0
    %492 = vmatpush1.msra.mxu0 0.0
    %493 = vmatprep.subr.mxu0 0.0
    %494 = vmatpush1.msra.mxu0 0.0
    %495 = vmatprep.subr.mxu0 0.0
    %496 = vmatpush1.msra.mxu0 0.0
    %497 = vmatprep.subr.mxu0 0.0
    %498 = vmatpush1.msra.mxu0 0.0
    %499 = vmatprep.subr.mxu0 0.0
    %500 = vmatpush1.msra.mxu0 0.0
    %501 = vmatprep.subr.mxu0 0.0
    %502 = vmatpush1.msra.mxu0 0.0
    %503 = vmatprep.subr.mxu0 0.0
    %504 = vmatpush1.msra.mxu0 0.0
    %505 = vmatprep.subr.mxu0 0.0
    %506 = vmatpush1.msra.mxu0 0.0
    %507 = vmatprep.subr.mxu0 0.0
    %508 = vmatpush1.msra.mxu0 0.0
    %509 = vmatprep.subr.mxu0 0.0
    %510 = vmatpush1.msra.mxu0 0.0
    %511 = vmatprep.subr.mxu0 0.0
    %512 = vmatpush1.msra.mxu0 0.0
    %513 = vmatprep.subr.mxu0 0.0
    %514 = vmatpush1.msra.mxu0 0.0
    %515 = vmatprep.subr.mxu0 0.0
    %516 = vmatpush1.msra.mxu0 0.0
    %517 = vmatprep.subr.mxu0 0.0
    %518 = vmatpush1.msra.mxu0 0.0
    %519 = vmatprep.subr.mxu0 0.0
    %520 = vmatpush1.msra.mxu0 0.0
    %521 = vmatprep.subr.mxu0 0.0
    %522 = vmatpush1.msra.mxu0 0.0
    %523 = vmatprep.subr.mxu0 0.0
    %524 = vmatpush1.msra.mxu0 0.0
    %525 = vmatprep.subr.mxu0 0.0
    %526 = vmatpush1.msra.mxu0 0.0
    %527 = vmatprep.subr.mxu0 0.0
    %528 = vmatpush1.msra.mxu0 0.0
    %529 = vmatprep.subr.mxu0 0.0
    %530 = vmatpush1.msra.mxu0 0.0
    %531 = vmatprep.subr.mxu0 0.0
    %532 = vmatpush1.msra.mxu0 0.0
    %533 = vmatprep.mubr.f32.mxu0 0.0
    %534 = vmatmul.mubr.f32.gmra.mrb[0].mxu0 %v464
    %v535 = vpop.f32.mrb[0].mxu0
    %v536 = vadd.f32 %v455, %v535
    %v537 = vpop.f32.mrb[0].mxu0
    %538 = vmatprep.mubr.f32.mxu0 0.0
    %539 = vmatmul.mubr.f32.gmra.mrb[0].mxu0 %v467
    %v540 = vpop.f32.mrb[0].mxu0
    %v541 = vadd.f32 %v460, %v540
    %v542 = vpop.f32.mrb[0].mxu0
    %543 = vdwg.mxu0
    %vm544 = vcmask 64512
    %v545 = vsel %vm544, %v536, 0.0
    %v546 = vrot.slane %v545, 4
    %v547 = vadd.f32 %v545, %v546
    %v548 = vrot.slane %v547, 2
    %v549 = vadd.f32 %v547, %v548
    %v550 = vrot.slane %v549, 1
    %v551 = vadd.f32 %v549, %v550
    %v552 = vmul.f32 %v551, 0.125
    %v553 = vlaneseq
    %v554 = vshrl.u32 %v553, 7
    %v555 = vsub.s32 0, %v554
    %v556 = vrot.slane %v541, %v555
    %v557 = vadd.f32 %v556, %v536
    %v558 = vsub.f32 %v557, %v552
    %559 = vst.msk [vmem:[#allocation14] sm:$0xff] %vm544, %v558
    // Predicated region
    $region58: #{dueling_dqn_forward.1} parent=1 // pred_check
      _
    $region59: #{dueling_dqn_forward.1} parent=1 // pred_check_branch
      %561 = sbr.rel (0) target = $region61
    $region60: #{dueling_dqn_forward.1} parent=1 // pred_region
      %s563 = ssub.s32 128, 128
      %564 = vsyncadd [#allocation4], %s563
      %s566 = sshll.u32 [#allocation14], 4
      %s567 = int_to_ptr.vmem [resolvable:$true] %s566
      %569 = dma.vmem_to_hbm [thread:$0]  %s567, 128, %s7, [#allocation4]
    $region61: #{dueling_dqn_forward.1} parent=1 // pred_fallthru
      _
    // Predicated region
    $region62: #{dueling_dqn_forward.1} parent=1 // pred_check
      _
    $region63: #{dueling_dqn_forward.1} parent=1 // pred_check_branch
      %571 = sbr.rel (0) target = $region65
    $region64: #{dueling_dqn_forward.1} parent=1 // pred_region
      %572 = dma.done [#allocation4], 128
    $region65: #{dueling_dqn_forward.1} parent=1 // pred_fallthru
      _
    %573 = vsyncpa [#allocation3], 1
    %574 = vsyncpa [#allocation6], 1
    %575 = vsyncpa [#allocation9], 1
    %576 = vsyncpa [#allocation12], 1
    %577 = vsyncpa [#allocation4], 1

</llo_original>
